<compile_context>
chip_gen: v7x
topology: tpu7x:2x2x1
jax: 0.10.0
libtpu: 0.0.40
codegen_flags: <defaults>
</compile_context>

<pallas_src>
import math

import numpy as np
import jax
import jax.numpy as jnp
from jax.experimental import pallas as pl
from jax.experimental.pallas import tpu as pltpu

_HI = jax.lax.Precision.HIGHEST  # only used by the pure-JAX reference


def _sparse_attention_kernel(x_ref, pm_ref, wq_ref, bq_ref, wv_ref, bv_ref,
                             wp_ref, bp_ref, seh_ref, she_ref, o_ref):
    """One block of `Bb` batch elements per grid step.

    x_ref  : (Bb, T, E)   input tokens
    pm_ref : (W*T, T)     pm[w*T + t, t'] = pos_mask[t', w, t]
    wq_ref : (E, E)       query/key projection, transposed + head-permuted (in, out)
    bq_ref : (1, E)
    wv_ref : (E, E)       value projection, transposed + head-permuted
    bv_ref : (1, E)
    wp_ref : (E, E)       post_att projection, transposed (in, out)
    bp_ref : (1, E)
    seh_ref: (E, H)       head-sum indicator:   S[e, h] = 1 iff e // d_k == h
    she_ref: (H, E)       head-broadcast indicator (transpose of seh)
    o_ref  : (Bb, T, E)
    """
    Bb, T, E = x_ref.shape
    W = pm_ref.shape[0] // T
    H = seh_ref.shape[1]
    scale = 1.0 / math.sqrt(float(E))  # PyTorch scales by sqrt(embed_size), not sqrt(d_k)

    x2 = x_ref[...].reshape(Bb * T, E)               # rows ordered (b, t)
    pm = pm_ref[...]                                 # (W*T, T)

    # attend_inputs, rows ordered (b, w, t):
    #   ai[(b,w,t), e] = sum_{t'} pos_mask[t', w, t] * x[b, t', e]
    # (tiny unrolled loop over the Bb packed batch elements; K = T per dot)
    ai_parts = [jnp.dot(pm, x_ref[b], preferred_element_type=jnp.float32)
                for b in range(Bb)]
    ai = ai_parts[0] if Bb == 1 else jnp.concatenate(ai_parts, axis=0)  # (Bb*W*T, E)

    # Fused Q/K projection: same weight and bias, one matmul over stacked rows.
    qk_in = jnp.concatenate([x2.astype(ai.dtype), ai], axis=0)          # ((1+W)*Bb*T, E)
    qk = jnp.dot(qk_in, wq_ref[...], preferred_element_type=jnp.float32) + bq_ref[...]
    q2 = qk[:Bb * T]                                                    # (Bb*T, E)
    k2 = qk[Bb * T:]                                                    # (Bb*W*T, E)
    v2 = jnp.dot(ai, wv_ref[...], preferred_element_type=jnp.float32) + bv_ref[...]

    # All-head scaled dot products: lane-dense product then head-sum matmul.
    q4 = q2.reshape(Bb, 1, T, E)
    k4 = k2.reshape(Bb, W, T, E)
    v4 = v2.reshape(Bb, W, T, E)
    prod = q4 * k4                                                      # (Bb, W, T, E)
    s = jnp.dot(prod.reshape(Bb * W * T, E), seh_ref[...],
                preferred_element_type=jnp.float32) * scale             # (Bb*W*T, H)
    s4 = s.reshape(Bb, W, T, H)

    # Softmax over the window axis W (axis=1) for all (b, t, h) at once.
    m = jnp.max(s4, axis=1, keepdims=True)
    p = jnp.exp(s4 - m)
    denom = jnp.sum(p, axis=1, keepdims=True)
    probs = p * pl.reciprocal(denom, approx=True)                       # (Bb, W, T, H)

    # Broadcast head probs back across their d_k columns (MXU) and combine values.
    probs_e = jnp.dot(probs.reshape(Bb * W * T, H), she_ref[...],
                      preferred_element_type=jnp.float32).reshape(Bb, W, T, E)
    ctx = jnp.sum(probs_e * v4, axis=1)                                 # (Bb, T, E)

    # Single output projection for all heads / tokens / packed batches.
    out = jnp.dot(ctx.reshape(Bb * T, E), wp_ref[...],
                  preferred_element_type=jnp.float32) + bp_ref[...]
    o_ref[...] = out.reshape(Bb, T, E).astype(o_ref.dtype)


def _pick_block_b(B, T):
    """Pack batches so projections see >=128 rows, keep >=2 grid steps, Bb | B."""
    target = max(1, 128 // max(T, 1))
    bb = min(B, target)
    while bb > 1 and (B % bb != 0 or (B // bb) < 2):
        bb -= 1
    return max(bb, 1)


def sparse_attention_forward(x, pos_mask, Wq, bq, Wv, bv, Wp, bp, num_heads,
                             block_b=None):
    """Pallas implementation of SparseAttention.forward."""
    B, T, E = x.shape
    Tm, W, Tm2 = pos_mask.shape
    assert Tm == T and Tm2 == T
    H = num_heads
    assert E % H == 0
    d_k = E // H

    Bb = _pick_block_b(B, T) if block_b is None else block_b
    assert B % Bb == 0

    # Permutation so new column h*d_k + j maps to old column j*H + h
    # (PyTorch splits E as (d_k, H) with head index fastest on the input side).
    perm = np.arange(E).reshape(d_k, H).T.reshape(-1)

    wq_t = jnp.asarray(Wq)[perm, :].T      # (E_in, E_out) head-major outputs
    bq_p = jnp.asarray(bq)[perm][None, :]  # (1, E)
    wv_t = jnp.asarray(Wv)[perm, :].T
    bv_p = jnp.asarray(bv)[perm][None, :]
    wp_t = jnp.asarray(Wp).T               # (E_in, E_out), NOT permuted (output side is head-major)
    bp_p = jnp.asarray(bp)[None, :]

    # pm_t[w*T + t, t'] = pos_mask[t', w, t]
    pm_t = jnp.transpose(pos_mask, (1, 2, 0)).reshape(W * T, T)

    # Head indicator matrices (head-major columns).
    seh_np = (np.arange(E)[:, None] // d_k == np.arange(H)[None, :]).astype(np.float32)
    s_eh = jnp.asarray(seh_np)            # (E, H)
    s_he = jnp.asarray(seh_np.T.copy())   # (H, E)

    # NOTE: at production BERT shapes (T~512, E~768, W~8) add a T-tile grid axis
    # (or raise vmem_limit_bytes) and use pipeline_mode=pl.Buffered(1) on the
    # constant weight/mask specs to save VMEM on v7x (64 MiB). Not needed at
    # these block sizes; output stores are already lane-dense whenever E is a
    # multiple of 128.
    out = pl.pallas_call(
        _sparse_attention_kernel,
        out_shape=jax.ShapeDtypeStruct((B, T, E), x.dtype),
        grid=(B // Bb,),
        in_specs=[
            pl.BlockSpec((Bb, T, E), lambda b: (b, 0, 0)),   # x
            pl.BlockSpec((W * T, T), lambda b: (0, 0)),      # pos_mask (rearranged)
            pl.BlockSpec((E, E), lambda b: (0, 0)),          # Wq^T (permuted)
            pl.BlockSpec((1, E), lambda b: (0, 0)),          # bq (permuted)
            pl.BlockSpec((E, E), lambda b: (0, 0)),          # Wv^T (permuted)
            pl.BlockSpec((1, E), lambda b: (0, 0)),          # bv (permuted)
            pl.BlockSpec((E, E), lambda b: (0, 0)),          # Wp^T
            pl.BlockSpec((1, E), lambda b: (0, 0)),          # bp
            pl.BlockSpec((E, H), lambda b: (0, 0)),          # head-sum indicator
            pl.BlockSpec((H, E), lambda b: (0, 0)),          # head-broadcast indicator
        ],
        out_specs=pl.BlockSpec((Bb, T, E), lambda b: (b, 0, 0)),
        compiler_params=pltpu.CompilerParams(
            dimension_semantics=("parallel",)),
    )(x, pm_t, wq_t, bq_p, wv_t, bv_p, wp_t, bp_p, s_eh, s_he)
    return out


def sparse_attention_reference(x, pos_mask, Wq, bq, Wv, bv, Wp, bp, num_heads):
    """Pure-JAX transcription of the PyTorch forward (for verification)."""
    B, T, E = x.shape
    _, W, _ = pos_mask.shape
    H = num_heads
    d_k = E // H

    ai_flat = jnp.einsum('bte,tf->bef', x, pos_mask.reshape(T, W * T), precision=_HI)
    ai = ai_flat.reshape(B, E, W, T).transpose(0, 3, 2, 1)                  # (B, T, W, E)

    q = jnp.einsum('bte,fe->btf', x, Wq, precision=_HI) + bq                # (B, T, E)
    k = jnp.einsum('btwe,fe->btwf', ai, Wq, precision=_HI) + bq             # (B, T, W, E)
    v = jnp.einsum('btwe,fe->btwf', ai, Wv, precision=_HI) + bv

    query = q.reshape(B, T, 1, d_k, H).transpose(0, 4, 1, 2, 3)             # (B, H, T, 1, d_k)
    key = k.reshape(B, T, W, d_k, H).transpose(0, 4, 1, 2, 3)               # (B, H, T, W, d_k)
    value = v.reshape(B, T, W, d_k, H).transpose(0, 4, 1, 2, 3)

    scores = jnp.einsum('bhtqd,bhtwd->bhtqw', query, key, precision=_HI) / math.sqrt(E)
    scores = jax.nn.softmax(scores, axis=-1)
    out = jnp.einsum('bhtqw,bhtwd->bhtqd', scores, value, precision=_HI)    # (B, H, T, 1, d_k)
    out = out.squeeze(3).transpose(0, 2, 1, 3).reshape(B, T, E)
    return jnp.einsum('bte,fe->btf', out, Wp, precision=_HI) + bp


if __name__ == "__main__":
    B, T, E, H, W = 2, 8, 32, 4, 4   # d_k = 8

    key = jax.random.PRNGKey(0)
    ks = jax.random.split(key, 8)
    x = jax.random.normal(ks[0], (B, T, E), jnp.float32)
    pos_mask = jax.random.normal(ks[1], (T, W, T), jnp.float32)

    # Deterministic synthetic parameters (PyTorch Linear: weight (out, in), bias (out,))
    Wq = jax.random.normal(ks[2], (E, E), jnp.float32) * 0.1
    bq = jax.random.normal(ks[3], (E,), jnp.float32) * 0.1
    Wv = jax.random.normal(ks[4], (E, E), jnp.float32) * 0.1
    bv = jax.random.normal(ks[5], (E,), jnp.float32) * 0.1
    Wp = jax.random.normal(ks[6], (E, E), jnp.float32) * 0.1
    bp = jax.random.normal(ks[7], (E,), jnp.float32) * 0.1

    out = sparse_attention_forward(x, pos_mask, Wq, bq, Wv, bv, Wp, bp, H)
    out = jax.block_until_ready(out)

    ref = sparse_attention_reference(x, pos_mask, Wq, bq, Wv, bv, Wp, bp, H)
    ref = jax.block_until_ready(ref)

    assert out.shape == (B, T, E)
    # Kernel uses default-precision (bf16-operand) MXU passes with f32 accumulation
    # and an approximate reciprocal, so allow slightly looser tolerance than v1.
    np.testing.assert_allclose(np.asarray(out), np.asarray(ref), rtol=2e-2, atol=2e-2)

    print("KERNEL_OK")
</pallas_src>

<mosaic_0001>
module attributes {stable_mosaic.version = 11 : i64} {
  func.func @_sparse_attention_kernel(%arg0: i32, %arg1: memref<1x8x32xf32, #tpu.memory_space<vmem>>, %arg2: memref<32x8xf32, #tpu.memory_space<vmem>>, %arg3: memref<32x32xf32, #tpu.memory_space<vmem>>, %arg4: memref<1x32xf32, #tpu.memory_space<vmem>>, %arg5: memref<32x32xf32, #tpu.memory_space<vmem>>, %arg6: memref<1x32xf32, #tpu.memory_space<vmem>>, %arg7: memref<32x32xf32, #tpu.memory_space<vmem>>, %arg8: memref<1x32xf32, #tpu.memory_space<vmem>>, %arg9: memref<32x4xf32, #tpu.memory_space<vmem>>, %arg10: memref<4x32xf32, #tpu.memory_space<vmem>>, %arg11: memref<1x8x32xf32, #tpu.memory_space<vmem>>) attributes {dimension_semantics = [#tpu.dimension_semantics<parallel>], iteration_bounds = array<i64: 2>, scalar_prefetch = 0 : i64, scratch_operands = 0 : i64, tpu.core_type = #tpu.core_type<tc>, window_params = [{transform_indices = @transform_0, window_bounds = array<i64: 1, 8, 32>}, {pipeline_mode = #tpu.pipeline_mode<synchronous>, transform_indices = @transform_1, window_bounds = array<i64: 32, 8>}, {pipeline_mode = #tpu.pipeline_mode<synchronous>, transform_indices = @transform_2, window_bounds = array<i64: 32, 32>}, {pipeline_mode = #tpu.pipeline_mode<synchronous>, transform_indices = @transform_3, window_bounds = array<i64: 1, 32>}, {pipeline_mode = #tpu.pipeline_mode<synchronous>, transform_indices = @transform_4, window_bounds = array<i64: 32, 32>}, {pipeline_mode = #tpu.pipeline_mode<synchronous>, transform_indices = @transform_5, window_bounds = array<i64: 1, 32>}, {pipeline_mode = #tpu.pipeline_mode<synchronous>, transform_indices = @transform_6, window_bounds = array<i64: 32, 32>}, {pipeline_mode = #tpu.pipeline_mode<synchronous>, transform_indices = @transform_7, window_bounds = array<i64: 1, 32>}, {pipeline_mode = #tpu.pipeline_mode<synchronous>, transform_indices = @transform_8, window_bounds = array<i64: 32, 4>}, {pipeline_mode = #tpu.pipeline_mode<synchronous>, transform_indices = @transform_9, window_bounds = array<i64: 4, 32>}, {transform_indices = @transform_10, window_bounds = array<i64: 1, 8, 32>}]} {
    %c0 = arith.constant 0 : index
    %c0_0 = arith.constant 0 : index
    %c0_1 = arith.constant 0 : index
    %0 = vector.load %arg1[%c0, %c0_0, %c0_1] : memref<1x8x32xf32, #tpu.memory_space<vmem>>, vector<1x8x32xf32>
    %1 = vector.shape_cast %0 : vector<1x8x32xf32> to vector<8x32xf32>
    %c0_2 = arith.constant 0 : index
    %c0_3 = arith.constant 0 : index
    %2 = vector.load %arg2[%c0_2, %c0_3] : memref<32x8xf32, #tpu.memory_space<vmem>>, vector<32x8xf32>
    %c0_4 = arith.constant 0 : index
    %c0_5 = arith.constant 0 : index
    %c0_6 = arith.constant 0 : index
    %3 = vector.load %arg1[%c0_4, %c0_5, %c0_6] : memref<1x8x32xf32, #tpu.memory_space<vmem>>, vector<1x8x32xf32>
    %4 = vector.shape_cast %3 : vector<1x8x32xf32> to vector<8x32xf32>
    %cst = arith.constant dense<0.000000e+00> : vector<32x32xf32>
    %5 = tpu.matmul %2, %4, %cst {dimension_numbers = #tpu.dot_dimension_numbers<[1], [0], [0], [1], [0, 0, 1, 1], [], []>} : vector<32x8xf32>, vector<8x32xf32>, vector<32x32xf32> -> vector<32x32xf32>
    %6 = tpu.concatenate %1, %5 in 0 : vector<8x32xf32>, vector<32x32xf32> -> vector<40x32xf32>
    %c0_7 = arith.constant 0 : index
    %c0_8 = arith.constant 0 : index
    %7 = vector.load %arg3[%c0_7, %c0_8] : memref<32x32xf32, #tpu.memory_space<vmem>>, vector<32x32xf32>
    %cst_9 = arith.constant dense<0.000000e+00> : vector<40x32xf32>
    %8 = tpu.matmul %6, %7, %cst_9 {dimension_numbers = #tpu.dot_dimension_numbers<[1], [0], [0], [1], [0, 0, 1, 1], [], []>} : vector<40x32xf32>, vector<32x32xf32>, vector<40x32xf32> -> vector<40x32xf32>
    %c0_10 = arith.constant 0 : index
    %c0_11 = arith.constant 0 : index
    %9 = vector.load %arg4[%c0_10, %c0_11] : memref<1x32xf32, #tpu.memory_space<vmem>>, vector<1x32xf32>
    %10 = vector.broadcast %9 : vector<1x32xf32> to vector<40x32xf32>
    %11 = arith.addf %8, %10 : vector<40x32xf32>
    %12 = vector.extract_strided_slice %11 {offsets = [0, 0], sizes = [8, 32], strides = [1, 1]} : vector<40x32xf32> to vector<8x32xf32>
    %13 = vector.extract_strided_slice %11 {offsets = [8, 0], sizes = [32, 32], strides = [1, 1]} : vector<40x32xf32> to vector<32x32xf32>
    %c0_12 = arith.constant 0 : index
    %c0_13 = arith.constant 0 : index
    %14 = vector.load %arg5[%c0_12, %c0_13] : memref<32x32xf32, #tpu.memory_space<vmem>>, vector<32x32xf32>
    %cst_14 = arith.constant dense<0.000000e+00> : vector<32x32xf32>
    %15 = tpu.matmul %5, %14, %cst_14 {dimension_numbers = #tpu.dot_dimension_numbers<[1], [0], [0], [1], [0, 0, 1, 1], [], []>} : vector<32x32xf32>, vector<32x32xf32>, vector<32x32xf32> -> vector<32x32xf32>
    %c0_15 = arith.constant 0 : index
    %c0_16 = arith.constant 0 : index
    %16 = vector.load %arg6[%c0_15, %c0_16] : memref<1x32xf32, #tpu.memory_space<vmem>>, vector<1x32xf32>
    %17 = vector.broadcast %16 : vector<1x32xf32> to vector<32x32xf32>
    %18 = arith.addf %15, %17 : vector<32x32xf32>
    %19 = vector.shape_cast %12 : vector<8x32xf32> to vector<1x1x8x32xf32>
    %20 = vector.shape_cast %13 : vector<32x32xf32> to vector<1x4x8x32xf32>
    %21 = vector.shape_cast %18 : vector<32x32xf32> to vector<1x4x8x32xf32>
    %22 = vector.broadcast %19 : vector<1x1x8x32xf32> to vector<1x4x8x32xf32>
    %23 = arith.mulf %22, %20 : vector<1x4x8x32xf32>
    %24 = vector.shape_cast %23 : vector<1x4x8x32xf32> to vector<32x32xf32>
    %c0_17 = arith.constant 0 : index
    %c0_18 = arith.constant 0 : index
    %25 = vector.load %arg9[%c0_17, %c0_18] : memref<32x4xf32, #tpu.memory_space<vmem>>, vector<32x4xf32>
    %cst_19 = arith.constant dense<0.000000e+00> : vector<32x4xf32>
    %26 = tpu.matmul %24, %25, %cst_19 {dimension_numbers = #tpu.dot_dimension_numbers<[1], [0], [0], [1], [0, 0, 1, 1], [], []>} : vector<32x32xf32>, vector<32x4xf32>, vector<32x4xf32> -> vector<32x4xf32>
    %cst_20 = arith.constant 0.176776692 : f32
    %27 = vector.broadcast %cst_20 : f32 to vector<32x4xf32>
    %28 = arith.mulf %26, %27 : vector<32x4xf32>
    %29 = vector.shape_cast %28 : vector<32x4xf32> to vector<1x4x8x4xf32>
    %cst_21 = arith.constant dense<0xFF800000> : vector<1x8x4xf32>
    %30 = vector.multi_reduction <maximumf>, %29, %cst_21 [1] : vector<1x4x8x4xf32> to vector<1x8x4xf32>
    %31 = vector.shape_cast %30 : vector<1x8x4xf32> to vector<1x1x8x4xf32>
    %32 = vector.broadcast %31 : vector<1x1x8x4xf32> to vector<1x4x8x4xf32>
    %33 = arith.subf %29, %32 : vector<1x4x8x4xf32>
    %34 = math.exp %33 : vector<1x4x8x4xf32>
    %cst_22 = arith.constant dense<0.000000e+00> : vector<1x8x4xf32>
    %35 = vector.multi_reduction <add>, %34, %cst_22 [1] : vector<1x4x8x4xf32> to vector<1x8x4xf32>
    %36 = vector.shape_cast %35 : vector<1x8x4xf32> to vector<1x1x8x4xf32>
    %37 = tpu.reciprocal %36 {approx = true} : vector<1x1x8x4xf32> -> vector<1x1x8x4xf32>
    %38 = vector.broadcast %37 : vector<1x1x8x4xf32> to vector<1x4x8x4xf32>
    %39 = arith.mulf %34, %38 : vector<1x4x8x4xf32>
    %40 = vector.shape_cast %39 : vector<1x4x8x4xf32> to vector<32x4xf32>
    %c0_23 = arith.constant 0 : index
    %c0_24 = arith.constant 0 : index
    %41 = vector.load %arg10[%c0_23, %c0_24] : memref<4x32xf32, #tpu.memory_space<vmem>>, vector<4x32xf32>
    %cst_25 = arith.constant dense<0.000000e+00> : vector<32x32xf32>
    %42 = tpu.matmul %40, %41, %cst_25 {dimension_numbers = #tpu.dot_dimension_numbers<[1], [0], [0], [1], [0, 0, 1, 1], [], []>} : vector<32x4xf32>, vector<4x32xf32>, vector<32x32xf32> -> vector<32x32xf32>
    %43 = vector.shape_cast %42 : vector<32x32xf32> to vector<1x4x8x32xf32>
    %44 = arith.mulf %43, %21 : vector<1x4x8x32xf32>
    %cst_26 = arith.constant dense<0.000000e+00> : vector<1x8x32xf32>
    %45 = vector.multi_reduction <add>, %44, %cst_26 [1] : vector<1x4x8x32xf32> to vector<1x8x32xf32>
    %46 = vector.shape_cast %45 : vector<1x8x32xf32> to vector<8x32xf32>
    %c0_27 = arith.constant 0 : index
    %c0_28 = arith.constant 0 : index
    %47 = vector.load %arg7[%c0_27, %c0_28] : memref<32x32xf32, #tpu.memory_space<vmem>>, vector<32x32xf32>
    %cst_29 = arith.constant dense<0.000000e+00> : vector<8x32xf32>
    %48 = tpu.matmul %46, %47, %cst_29 {dimension_numbers = #tpu.dot_dimension_numbers<[1], [0], [0], [1], [0, 0, 1, 1], [], []>} : vector<8x32xf32>, vector<32x32xf32>, vector<8x32xf32> -> vector<8x32xf32>
    %c0_30 = arith.constant 0 : index
    %c0_31 = arith.constant 0 : index
    %49 = vector.load %arg8[%c0_30, %c0_31] : memref<1x32xf32, #tpu.memory_space<vmem>>, vector<1x32xf32>
    %50 = vector.broadcast %49 : vector<1x32xf32> to vector<8x32xf32>
    %51 = arith.addf %48, %50 : vector<8x32xf32>
    %52 = vector.shape_cast %51 : vector<8x32xf32> to vector<1x8x32xf32>
    %c0_32 = arith.constant 0 : index
    %c0_33 = arith.constant 0 : index
    %c0_34 = arith.constant 0 : index
    %53 = vector.load %arg11[%c0_32, %c0_33, %c0_34] : memref<1x8x32xf32, #tpu.memory_space<vmem>>, vector<1x8x32xf32>
    tpu.vector_store %arg11[%c0_32, %c0_33, %c0_34], %52 {strides = array<i32>} : memref<1x8x32xf32, #tpu.memory_space<vmem>>, vector<1x8x32xf32>,
    return
  }
  func.func @transform_0(%arg0: i32) -> (i32, i32, i32) {
    %c0_i32 = arith.constant 0 : i32
    %c0_i32_0 = arith.constant 0 : i32
    %c0_i32_1 = arith.constant 0 : i32
    return %arg0, %c0_i32, %c0_i32_0 : i32, i32, i32
  }
  func.func @transform_1(%arg0: i32) -> (i32, i32) {
    %c0_i32 = arith.constant 0 : i32
    %c0_i32_0 = arith.constant 0 : i32
    %c0_i32_1 = arith.constant 0 : i32
    return %c0_i32, %c0_i32_0 : i32, i32
  }
  func.func @transform_2(%arg0: i32) -> (i32, i32) {
    %c0_i32 = arith.constant 0 : i32
    %c0_i32_0 = arith.constant 0 : i32
    %c0_i32_1 = arith.constant 0 : i32
    return %c0_i32, %c0_i32_0 : i32, i32
  }
  func.func @transform_3(%arg0: i32) -> (i32, i32) {
    %c0_i32 = arith.constant 0 : i32
    %c0_i32_0 = arith.constant 0 : i32
    %c0_i32_1 = arith.constant 0 : i32
    return %c0_i32, %c0_i32_0 : i32, i32
  }
  func.func @transform_4(%arg0: i32) -> (i32, i32) {
    %c0_i32 = arith.constant 0 : i32
    %c0_i32_0 = arith.constant 0 : i32
    %c0_i32_1 = arith.constant 0 : i32
    return %c0_i32, %c0_i32_0 : i32, i32
  }
  func.func @transform_5(%arg0: i32) -> (i32, i32) {
    %c0_i32 = arith.constant 0 : i32
    %c0_i32_0 = arith.constant 0 : i32
    %c0_i32_1 = arith.constant 0 : i32
    return %c0_i32, %c0_i32_0 : i32, i32
  }
  func.func @transform_6(%arg0: i32) -> (i32, i32) {
    %c0_i32 = arith.constant 0 : i32
    %c0_i32_0 = arith.constant 0 : i32
    %c0_i32_1 = arith.constant 0 : i32
    return %c0_i32, %c0_i32_0 : i32, i32
  }
  func.func @transform_7(%arg0: i32) -> (i32, i32) {
    %c0_i32 = arith.constant 0 : i32
    %c0_i32_0 = arith.constant 0 : i32
    %c0_i32_1 = arith.constant 0 : i32
    return %c0_i32, %c0_i32_0 : i32, i32
  }
  func.func @transform_8(%arg0: i32) -> (i32, i32) {
    %c0_i32 = arith.constant 0 : i32
    %c0_i32_0 = arith.constant 0 : i32
    %c0_i32_1 = arith.constant 0 : i32
    return %c0_i32, %c0_i32_0 : i32, i32
  }
  func.func @transform_9(%arg0: i32) -> (i32, i32) {
    %c0_i32 = arith.constant 0 : i32
    %c0_i32_0 = arith.constant 0 : i32
    %c0_i32_1 = arith.constant 0 : i32
    return %c0_i32, %c0_i32_0 : i32, i32
  }
  func.func @transform_10(%arg0: i32) -> (i32, i32, i32) {
    %c0_i32 = arith.constant 0 : i32
    %c0_i32_0 = arith.constant 0 : i32
    %c0_i32_1 = arith.constant 0 : i32
    return %arg0, %c0_i32, %c0_i32_0 : i32, i32, i32
  }
}

</mosaic_0001>

<llo_original>
// kernel: tpu_custom_call.1
$region0: #{tpu_custom_call.1}
  #allocation0 [shape = 'u32[]', space=smem, size = 0x4, offset = 0x4, fixed_abs, tag = 'smem constant byte address 0x4 - core index']
  #allocation1 [shape = 'u32[144,128]{1,0:T(1,128)}', space=vmem, size = 0x12000, scoped, tag = 'internal scratch']
  %s0 = inlined_call_operand.hbm [shape: f32[2,8,32], index: 0, kind: input, shape index: {}]
  %s1 = inlined_call_operand.vmem [shape: f32[32,8], index: 1, kind: input, shape index: {}]
  %s2 = inlined_call_operand.vmem [shape: f32[32,32], index: 2, kind: input, shape index: {}]
  %s3 = inlined_call_operand.vmem [shape: f32[1,32], index: 3, kind: input, shape index: {}]
  %s4 = inlined_call_operand.vmem [shape: f32[32,32], index: 4, kind: input, shape index: {}]
  %s5 = inlined_call_operand.vmem [shape: f32[1,32], index: 5, kind: input, shape index: {}]
  %s6 = inlined_call_operand.vmem [shape: f32[32,32], index: 6, kind: input, shape index: {}]
  %s7 = inlined_call_operand.hbm [shape: f32[1,32], index: 7, kind: input, shape index: {}]
  %s8 = inlined_call_operand.vmem [shape: f32[32,4], index: 8, kind: input, shape index: {}]
  %s9 = inlined_call_operand.vmem [shape: f32[4,32], index: 9, kind: input, shape index: {}]
  %s10 = inlined_call_operand.hbm [shape: f32[2,8,32], index: 10, kind: output, shape index: {}]
  %s11 = sld [smem:[#allocation0]]
  $region81: #{tpu_custom_call.1} parent=0
    _
  %s13 = ssub.s32 1, %s11
  %s14 = scalar_select 0, %s13, %s11
  $region1: #{tpu_custom_call.1} parent=0
    #allocation2 [shape = 'u8[8192]{0}', space=vmem, size = 0x2000, scoped, tag = 'input window, operand 0']
    #allocation3 [shape = 's32[2]{0}', space=sflag, size = 0x8, scoped, tag = 'scoped memory for tpu_custom_call.1']
    #allocation4 [shape = 's32[2]{0}', space=sflag, size = 0x8, scoped, tag = 'scoped memory for tpu_custom_call.1']
    #allocation5 [shape = 'u8[512]{0}', space=vmem, size = 0x400, scoped, tag = 'input window, operand 7, single buffered']
    #allocation6 [shape = 's32[1]{0}', space=sflag, size = 0x4, scoped, tag = 'scoped memory for tpu_custom_call.1']
    #allocation7 [shape = 'u8[8192]{0}', space=vmem, size = 0x2000, scoped, tag = 'output window, operand 0']
    %15 = vsyncpa [#allocation3], 0
    %s16 = scalar_lea.sflag [#allocation3], 1
    %17 = vsyncpa %s16, 0
    %18 = vsyncpa [#allocation6], 0
    %19 = vsyncpa [#allocation4], 0
    %s20 = scalar_lea.sflag [#allocation4], 1
    %21 = vsyncpa %s20, 0
    loop: start=0, step=1, limit=4
    $region2: #{tpu_custom_call.1} parent=1 // loop_pre_header
      _
    $region3: #{tpu_custom_call.1} parent=1 // loop_header
      %s23 = sphi 0, %s27
      %p24 = scmp.ge.s32.totalorder %s23, 4
      %s33 = sphi 0, %s35
      %s36 = sphi 0, %s33
      %s37 = sphi 0, %s36
      %s53 = sphi 0, %s37
      %s57 = sphi 0, %s57
      %s59 = sphi 0, %s57
      %s60 = sphi 0, %s59
      %s74 = sphi 0, %s60
      %s78 = sphi 0, %s78
      %s80 = sphi 0, %s78
      %s81 = sphi 0, %s80
      %s95 = sphi 0, %s81
      %s99 = sphi 0, %s99
      %s101 = sphi 0, %s99
      %s102 = sphi 0, %s101
      %s116 = sphi 0, %s102
      %s120 = sphi 0, %s120
      %s122 = sphi 0, %s120
      %s123 = sphi 0, %s122
      %s137 = sphi 0, %s123
      %s141 = sphi 0, %s141
      %s143 = sphi 0, %s141
      %s144 = sphi 0, %s143
      %s158 = sphi 0, %s144
      %s162 = sphi 0, %s162
      %s164 = sphi 0, %s162
      %s165 = sphi 0, %s164
      %s179 = sphi 0, %s165
      %s183 = sphi 0, %s183
      %s185 = sphi 0, %s183
      %s186 = sphi 0, %s185
      %s200 = sphi 0, %s186
      %s204 = sphi 0, %s204
      %s206 = sphi 0, %s204
      %s207 = sphi 0, %s206
      %s221 = sphi 0, %s207
      %s225 = sphi 0, %s225
      %s227 = sphi 0, %s225
      %s228 = sphi 0, %s227
      %s242 = sphi 0, %s228
      %s248 = sphi 0, %s250
      %s251 = sphi 0, %s248
      %s252 = sphi 0, %s251
      %s268 = sphi 0, %s252
    $region4: #{tpu_custom_call.1} parent=1 // loop_header_branch
      %26 = sbr.rel (%p24) target = $region8
    $region5: #{tpu_custom_call.1} parent=1 // loop_body
      %s28 = ssub.s32 %s23, 1
      %s29 = ssub.s32 %s23, 2
      %s30 = sadd.s32 %s23, 1
      %s31 = ssub.s32 %s23, %s30
      %p32 = scmp.eq.s32.totalorder %s31, 0
      %s34 = sadd.s32 %s33, 1
      %s35 = scalar_select %p32, %s33, %s34
      %p38 = pneg %p32
      %p39 = scmp.eq.s32.totalorder %s23, 1
      %p40 = por %p38, %p39
      %p41 = scmp.ne.s32.totalorder %s33, %s36
      %p42 = scmp.eq.s32.totalorder %s23, 0
      %p43 = por %p41, %p42
      %p44 = scmp.ne.s32.totalorder %s33, %s36
      %p45 = scmp.eq.s32.totalorder %s28, 1
      %p46 = por %p44, %p45
      %p47 = scmp.ne.s32.totalorder %s36, %s37
      %p48 = scmp.eq.s32.totalorder %s28, 0
      %p49 = por %p47, %p48
      %p50 = scmp.ne.s32.totalorder %s36, %s37
      %p51 = scmp.eq.s32.totalorder %s29, 1
      %p52 = por %p50, %p51
      %p54 = scmp.ne.s32.totalorder %s37, %s53
      %p55 = scmp.eq.s32.totalorder %s29, 0
      %p56 = por %p54, %p55
      %s58 = sadd.s32 %s57, 1
      %p61 = scmp.eq.s32.totalorder %s23, 1
      %p62 = scmp.ne.s32.totalorder %s57, %s59
      %p63 = scmp.eq.s32.totalorder %s23, 0
      %p64 = por %p62, %p63
      %p65 = scmp.ne.s32.totalorder %s57, %s59
      %p66 = scmp.eq.s32.totalorder %s28, 1
      %p67 = por %p65, %p66
      %p68 = scmp.ne.s32.totalorder %s59, %s60
      %p69 = scmp.eq.s32.totalorder %s28, 0
      %p70 = por %p68, %p69
      %p71 = scmp.ne.s32.totalorder %s59, %s60
      %p72 = scmp.eq.s32.totalorder %s29, 1
      %p73 = por %p71, %p72
      %p75 = scmp.ne.s32.totalorder %s60, %s74
      %p76 = scmp.eq.s32.totalorder %s29, 0
      %p77 = por %p75, %p76
      %s79 = sadd.s32 %s78, 1
      %p82 = scmp.eq.s32.totalorder %s23, 1
      %p83 = scmp.ne.s32.totalorder %s78, %s80
      %p84 = scmp.eq.s32.totalorder %s23, 0
      %p85 = por %p83, %p84
      %p86 = scmp.ne.s32.totalorder %s78, %s80
      %p87 = scmp.eq.s32.totalorder %s28, 1
      %p88 = por %p86, %p87
      %p89 = scmp.ne.s32.totalorder %s80, %s81
      %p90 = scmp.eq.s32.totalorder %s28, 0
      %p91 = por %p89, %p90
      %p92 = scmp.ne.s32.totalorder %s80, %s81
      %p93 = scmp.eq.s32.totalorder %s29, 1
      %p94 = por %p92, %p93
      %p96 = scmp.ne.s32.totalorder %s81, %s95
      %p97 = scmp.eq.s32.totalorder %s29, 0
      %p98 = por %p96, %p97
      %s100 = sadd.s32 %s99, 1
      %p103 = scmp.eq.s32.totalorder %s23, 1
      %p104 = scmp.ne.s32.totalorder %s99, %s101
      %p105 = scmp.eq.s32.totalorder %s23, 0
      %p106 = por %p104, %p105
      %p107 = scmp.ne.s32.totalorder %s99, %s101
      %p108 = scmp.eq.s32.totalorder %s28, 1
      %p109 = por %p107, %p108
      %p110 = scmp.ne.s32.totalorder %s101, %s102
      %p111 = scmp.eq.s32.totalorder %s28, 0
      %p112 = por %p110, %p111
      %p113 = scmp.ne.s32.totalorder %s101, %s102
      %p114 = scmp.eq.s32.totalorder %s29, 1
      %p115 = por %p113, %p114
      %p117 = scmp.ne.s32.totalorder %s102, %s116
      %p118 = scmp.eq.s32.totalorder %s29, 0
      %p119 = por %p117, %p118
      %s121 = sadd.s32 %s120, 1
      %p124 = scmp.eq.s32.totalorder %s23, 1
      %p125 = scmp.ne.s32.totalorder %s120, %s122
      %p126 = scmp.eq.s32.totalorder %s23, 0
      %p127 = por %p125, %p126
      %p128 = scmp.ne.s32.totalorder %s120, %s122
      %p129 = scmp.eq.s32.totalorder %s28, 1
      %p130 = por %p128, %p129
      %p131 = scmp.ne.s32.totalorder %s122, %s123
      %p132 = scmp.eq.s32.totalorder %s28, 0
      %p133 = por %p131, %p132
      %p134 = scmp.ne.s32.totalorder %s122, %s123
      %p135 = scmp.eq.s32.totalorder %s29, 1
      %p136 = por %p134, %p135
      %p138 = scmp.ne.s32.totalorder %s123, %s137
      %p139 = scmp.eq.s32.totalorder %s29, 0
      %p140 = por %p138, %p139
      %s142 = sadd.s32 %s141, 1
      %p145 = scmp.eq.s32.totalorder %s23, 1
      %p146 = scmp.ne.s32.totalorder %s141, %s143
      %p147 = scmp.eq.s32.totalorder %s23, 0
      %p148 = por %p146, %p147
      %p149 = scmp.ne.s32.totalorder %s141, %s143
      %p150 = scmp.eq.s32.totalorder %s28, 1
      %p151 = por %p149, %p150
      %p152 = scmp.ne.s32.totalorder %s143, %s144
      %p153 = scmp.eq.s32.totalorder %s28, 0
      %p154 = por %p152, %p153
      %p155 = scmp.ne.s32.totalorder %s143, %s144
      %p156 = scmp.eq.s32.totalorder %s29, 1
      %p157 = por %p155, %p156
      %p159 = scmp.ne.s32.totalorder %s144, %s158
      %p160 = scmp.eq.s32.totalorder %s29, 0
      %p161 = por %p159, %p160
      %s163 = sadd.s32 %s162, 1
      %p166 = scmp.eq.s32.totalorder %s23, 1
      %p167 = scmp.ne.s32.totalorder %s162, %s164
      %p168 = scmp.eq.s32.totalorder %s23, 0
      %p169 = por %p167, %p168
      %p170 = scmp.ne.s32.totalorder %s162, %s164
      %p171 = scmp.eq.s32.totalorder %s28, 1
      %p172 = por %p170, %p171
      %p173 = scmp.ne.s32.totalorder %s164, %s165
      %p174 = scmp.eq.s32.totalorder %s28, 0
      %p175 = por %p173, %p174
      %p176 = scmp.ne.s32.totalorder %s164, %s165
      %p177 = scmp.eq.s32.totalorder %s29, 1
      %p178 = por %p176, %p177
      %p180 = scmp.ne.s32.totalorder %s165, %s179
      %p181 = scmp.eq.s32.totalorder %s29, 0
      %p182 = por %p180, %p181
      %s184 = sadd.s32 %s183, 1
      %p187 = scmp.eq.s32.totalorder %s23, 1
      %p188 = scmp.ne.s32.totalorder %s183, %s185
      %p189 = scmp.eq.s32.totalorder %s23, 0
      %p190 = por %p188, %p189
      %p191 = scmp.ne.s32.totalorder %s183, %s185
      %p192 = scmp.eq.s32.totalorder %s28, 1
      %p193 = por %p191, %p192
      %p194 = scmp.ne.s32.totalorder %s185, %s186
      %p195 = scmp.eq.s32.totalorder %s28, 0
      %p196 = por %p194, %p195
      %p197 = scmp.ne.s32.totalorder %s185, %s186
      %p198 = scmp.eq.s32.totalorder %s29, 1
      %p199 = por %p197, %p198
      %p201 = scmp.ne.s32.totalorder %s186, %s200
      %p202 = scmp.eq.s32.totalorder %s29, 0
      %p203 = por %p201, %p202
      %s205 = sadd.s32 %s204, 1
      %p208 = scmp.eq.s32.totalorder %s23, 1
      %p209 = scmp.ne.s32.totalorder %s204, %s206
      %p210 = scmp.eq.s32.totalorder %s23, 0
      %p211 = por %p209, %p210
      %p212 = scmp.ne.s32.totalorder %s204, %s206
      %p213 = scmp.eq.s32.totalorder %s28, 1
      %p214 = por %p212, %p213
      %p215 = scmp.ne.s32.totalorder %s206, %s207
      %p216 = scmp.eq.s32.totalorder %s28, 0
      %p217 = por %p215, %p216
      %p218 = scmp.ne.s32.totalorder %s206, %s207
      %p219 = scmp.eq.s32.totalorder %s29, 1
      %p220 = por %p218, %p219
      %p222 = scmp.ne.s32.totalorder %s207, %s221
      %p223 = scmp.eq.s32.totalorder %s29, 0
      %p224 = por %p222, %p223
      %s226 = sadd.s32 %s225, 1
      %p229 = scmp.eq.s32.totalorder %s23, 1
      %p230 = scmp.ne.s32.totalorder %s225, %s227
      %p231 = scmp.eq.s32.totalorder %s23, 0
      %p232 = por %p230, %p231
      %p233 = scmp.ne.s32.totalorder %s225, %s227
      %p234 = scmp.eq.s32.totalorder %s28, 1
      %p235 = por %p233, %p234
      %p236 = scmp.ne.s32.totalorder %s227, %s228
      %p237 = scmp.eq.s32.totalorder %s28, 0
      %p238 = por %p236, %p237
      %p239 = scmp.ne.s32.totalorder %s227, %s228
      %p240 = scmp.eq.s32.totalorder %s29, 1
      %p241 = por %p239, %p240
      %p243 = scmp.ne.s32.totalorder %s228, %s242
      %p244 = scmp.eq.s32.totalorder %s29, 0
      %p245 = por %p243, %p244
      %s246 = ssub.s32 %s23, %s30
      %p247 = scmp.eq.s32.totalorder %s246, 0
      %s249 = sadd.s32 %s248, 1
      %s250 = scalar_select %p247, %s248, %s249
      %p253 = pneg %p247
      %p254 = scmp.eq.s32.totalorder %s23, 1
      %p255 = por %p253, %p254
      %p256 = scmp.ne.s32.totalorder %s248, %s251
      %p257 = scmp.eq.s32.totalorder %s23, 0
      %p258 = por %p256, %p257
      %p259 = scmp.ne.s32.totalorder %s248, %s251
      %p260 = scmp.eq.s32.totalorder %s28, 1
      %p261 = por %p259, %p260
      %p262 = scmp.ne.s32.totalorder %s251, %s252
      %p263 = scmp.eq.s32.totalorder %s28, 0
      %p264 = por %p262, %p263
      %p265 = scmp.ne.s32.totalorder %s251, %s252
      %p266 = scmp.eq.s32.totalorder %s29, 1
      %p267 = por %p265, %p266
      %p269 = scmp.ne.s32.totalorder %s252, %s268
      %p270 = scmp.eq.s32.totalorder %s29, 0
      %p271 = por %p269, %p270
      %p272 = scmp.le.s32.totalorder 1, %s23
      %p273 = scmp.lt.s32.totalorder %s23, 3
      %p274 = pnand %p272, %p273
      %p275 = pneg %p274
      // Predicated region
      $region9: #{tpu_custom_call.1} parent=5 // pred_check
        _
      $region10: #{tpu_custom_call.1} parent=5 // pred_check_branch
        %277 = sbr.rel (%p274) target = $region12
      $region11: #{tpu_custom_call.1} parent=5 // pred_region
        %s278 = ssub.s32 %s23, 1
        // Predicated region
        $region13: #{tpu_custom_call.1} parent=11 // pred_check
          %p279 = pneg %p70
        $region14: #{tpu_custom_call.1} parent=11 // pred_check_branch
          %281 = sbr.rel (%p279) target = $region16
        $region15: #{tpu_custom_call.1} parent=11 // pred_region
          _
        $region16: #{tpu_custom_call.1} parent=11 // pred_fallthru
          _
        // Predicated region
        $region17: #{tpu_custom_call.1} parent=11 // pred_check
          %p282 = pneg %p91
        $region18: #{tpu_custom_call.1} parent=11 // pred_check_branch
          %284 = sbr.rel (%p282) target = $region20
        $region19: #{tpu_custom_call.1} parent=11 // pred_region
          _
        $region20: #{tpu_custom_call.1} parent=11 // pred_fallthru
          _
        // Predicated region
        $region21: #{tpu_custom_call.1} parent=11 // pred_check
          %p285 = pneg %p112
        $region22: #{tpu_custom_call.1} parent=11 // pred_check_branch
          %287 = sbr.rel (%p285) target = $region24
        $region23: #{tpu_custom_call.1} parent=11 // pred_region
          _
        $region24: #{tpu_custom_call.1} parent=11 // pred_fallthru
          _
        // Predicated region
        $region25: #{tpu_custom_call.1} parent=11 // pred_check
          %p288 = pneg %p133
        $region26: #{tpu_custom_call.1} parent=11 // pred_check_branch
          %290 = sbr.rel (%p288) target = $region28
        $region27: #{tpu_custom_call.1} parent=11 // pred_region
          _
        $region28: #{tpu_custom_call.1} parent=11 // pred_fallthru
          _
        // Predicated region
        $region29: #{tpu_custom_call.1} parent=11 // pred_check
          %p291 = pneg %p154
        $region30: #{tpu_custom_call.1} parent=11 // pred_check_branch
          %293 = sbr.rel (%p291) target = $region32
        $region31: #{tpu_custom_call.1} parent=11 // pred_region
          _
        $region32: #{tpu_custom_call.1} parent=11 // pred_fallthru
          _
        // Predicated region
        $region33: #{tpu_custom_call.1} parent=11 // pred_check
          %p294 = pneg %p175
        $region34: #{tpu_custom_call.1} parent=11 // pred_check_branch
          %296 = sbr.rel (%p294) target = $region36
        $region35: #{tpu_custom_call.1} parent=11 // pred_region
          _
        $region36: #{tpu_custom_call.1} parent=11 // pred_fallthru
          _
        // Predicated region
        $region37: #{tpu_custom_call.1} parent=11 // pred_check
          %p297 = pneg %p196
        $region38: #{tpu_custom_call.1} parent=11 // pred_check_branch
          %299 = sbr.rel (%p297) target = $region40
        $region39: #{tpu_custom_call.1} parent=11 // pred_region
          %s301 = ssub.s32 16, 16
          %302 = vsyncadd [#allocation6], %s301
          %s304 = sshll.u32 [#allocation5], 4
          %s305 = int_to_ptr.vmem [resolvable:$true] %s304
          %307 = dma.hbm_to_vmem [thread:$0]  %s7, 16, %s305, [#allocation6]
        $region40: #{tpu_custom_call.1} parent=11 // pred_fallthru
          _
        // Predicated region
        $region41: #{tpu_custom_call.1} parent=11 // pred_check
          %p308 = pneg %p217
        $region42: #{tpu_custom_call.1} parent=11 // pred_check_branch
          %310 = sbr.rel (%p308) target = $region44
        $region43: #{tpu_custom_call.1} parent=11 // pred_region
          _
        $region44: #{tpu_custom_call.1} parent=11 // pred_fallthru
          _
        // Predicated region
        $region45: #{tpu_custom_call.1} parent=11 // pred_check
          %p311 = pneg %p238
        $region46: #{tpu_custom_call.1} parent=11 // pred_check_branch
          %313 = sbr.rel (%p311) target = $region48
        $region47: #{tpu_custom_call.1} parent=11 // pred_region
          _
        $region48: #{tpu_custom_call.1} parent=11 // pred_fallthru
          _
      $region12: #{tpu_custom_call.1} parent=5 // pred_fallthru
        _
      %p314 = scmp.lt.s32.totalorder %s23, 2
      // Predicated region
      $region49: #{tpu_custom_call.1} parent=5 // pred_check
        %p315 = pneg %p314
      $region50: #{tpu_custom_call.1} parent=5 // pred_check_branch
        %317 = sbr.rel (%p315) target = $region52
      $region51: #{tpu_custom_call.1} parent=5 // pred_region
        // Predicated region
        $region53: #{tpu_custom_call.1} parent=51 // pred_check
          %p318 = pneg %p43
        $region54: #{tpu_custom_call.1} parent=51 // pred_check_branch
          %320 = sbr.rel (%p318) target = $region56
        $region55: #{tpu_custom_call.1} parent=51 // pred_region
          %s321 = sand.u32 %s33, 1
          %s322 = scalar_lea.sflag [#allocation3], %s321
          %s323 = sand.u32 %s33, 1
          %s324 = smul.addr %s323, 8
          %s325 = scalar_lea.vmem [#allocation2], %s324
          %s327 = ssub.s32 128, 128
          %328 = vsyncadd %s322, %s327
          %s329 = smul.addr %s23, 128
          %s330 = scalar_lea.hbm %s0, %s329
          %s332 = sshll.u32 %s325, 4
          %s333 = int_to_ptr.vmem [resolvable:$true] %s332
          %335 = dma.hbm_to_vmem [thread:$0]  %s330, 128, %s333, %s322
        $region56: #{tpu_custom_call.1} parent=51 // pred_fallthru
          _
      $region52: #{tpu_custom_call.1} parent=5 // pred_fallthru
        _
      %p336 = scmp.le.s32.totalorder 1, %s23
      %p337 = scmp.lt.s32.totalorder %s23, 3
      %p338 = pnand %p336, %p337
      %p339 = pneg %p338
      // Predicated region
      $region57: #{tpu_custom_call.1} parent=5 // pred_check
        _
      $region58: #{tpu_custom_call.1} parent=5 // pred_check_branch
        %341 = sbr.rel (%p338) target = $region60
      $region59: #{tpu_custom_call.1} parent=5 // pred_region
        %s342 = ssub.s32 %s23, 1
        %s343 = sand.u32 %s36, 1
        %s344 = scalar_lea.sflag [#allocation3], %s343
        %s345 = sand.u32 %s36, 1
        %s346 = smul.addr %s345, 8
        %s347 = scalar_lea.vmem [#allocation2], %s346
        // Predicated region
        $region61: #{tpu_custom_call.1} parent=59 // pred_check
          %p348 = pneg %p49
        $region62: #{tpu_custom_call.1} parent=59 // pred_check_branch
          %350 = sbr.rel (%p348) target = $region64
        $region63: #{tpu_custom_call.1} parent=59 // pred_region
          %351 = dma.done %s344, 128
        $region64: #{tpu_custom_call.1} parent=59 // pred_fallthru
          _
        // Predicated region
        $region65: #{tpu_custom_call.1} parent=59 // pred_check
          %p352 = pneg %p196
        $region66: #{tpu_custom_call.1} parent=59 // pred_check_branch
          %354 = sbr.rel (%p352) target = $region68
        $region67: #{tpu_custom_call.1} parent=59 // pred_region
          %355 = dma.done [#allocation6], 16
        $region68: #{tpu_custom_call.1} parent=59 // pred_fallthru
          _
        %s356 = sand.u32 %s36, 1
        %s357 = scalar_lea.sflag [#allocation3], %s356
        %s358 = sand.u32 %s36, 1
        %s359 = smul.addr %s358, 8
        %s360 = scalar_lea.vmem [#allocation2], %s359
        %p361 = pneg %p49
        %p362 = pneg %p46
        %p363 = pneg %p70
        %p364 = pneg %p67
        %p365 = pneg %p91
        %p366 = pneg %p88
        %p367 = pneg %p112
        %p368 = pneg %p109
        %p369 = pneg %p133
        %p370 = pneg %p130
        %p371 = pneg %p154
        %p372 = pneg %p151
        %p373 = pneg %p175
        %p374 = pneg %p172
        %p375 = pneg %p196
        %p376 = pneg %p193
        %p377 = pneg %p217
        %p378 = pneg %p214
        %p379 = pneg %p238
        %p380 = pneg %p235
        %p381 = pneg %p264
        %p382 = pneg %p261
        %s383 = sand.u32 %s251, 1
        %s384 = scalar_lea.sflag [#allocation4], %s383
        %s385 = sand.u32 %s251, 1
        %s386 = smul.addr %s385, 8
        %s387 = scalar_lea.vmem [#allocation7], %s386
        %v388 = vld [vmem:[%s347] sm:$0xff]
        %v389 = vld [vmem:[%s1] sm:$0xff]
        %v390 = vld [vmem:[%s1 + $0x8] sm:$0xff]
        %v391 = vld [vmem:[%s1 + $0x10] sm:$0xff]
        %v392 = vld [vmem:[%s1 + $0x18] sm:$0xff]
        %vm393 = vcmask 64512
        %v395 = vsel %vm393, %v389, 0
        %v398 = vsel %vm393, %v390, 0
        %v401 = vsel %vm393, %v391, 0
        %v404 = vsel %vm393, %v392, 0
        %406 = vmatprep.subr.mxu0 0.0
        %407 = vmatpush1.msra.mxu0 %v388
        %408 = vmatprep.subr.mxu0 0.0
        %409 = vmatpush1.msra.mxu0 0.0
        %410 = vmatprep.subr.mxu0 0.0
        %411 = vmatpush1.msra.mxu0 0.0
        %412 = vmatprep.subr.mxu0 0.0
        %413 = vmatpush1.msra.mxu0 0.0
        %414 = vmatprep.subr.mxu0 0.0
        %415 = vmatpush1.msra.mxu0 0.0
        %416 = vmatprep.subr.mxu0 0.0
        %417 = vmatpush1.msra.mxu0 0.0
        %418 = vmatprep.subr.mxu0 0.0
        %419 = vmatpush1.msra.mxu0 0.0
        %420 = vmatprep.subr.mxu0 0.0
        %421 = vmatpush1.msra.mxu0 0.0
        %422 = vmatprep.subr.mxu0 0.0
        %423 = vmatpush1.msra.mxu0 0.0
        %424 = vmatprep.subr.mxu0 0.0
        %425 = vmatpush1.msra.mxu0 0.0
        %426 = vmatprep.subr.mxu0 0.0
        %427 = vmatpush1.msra.mxu0 0.0
        %428 = vmatprep.subr.mxu0 0.0
        %429 = vmatpush1.msra.mxu0 0.0
        %430 = vmatprep.subr.mxu0 0.0
        %431 = vmatpush1.msra.mxu0 0.0
        %432 = vmatprep.subr.mxu0 0.0
        %433 = vmatpush1.msra.mxu0 0.0
        %434 = vmatprep.subr.mxu0 0.0
        %435 = vmatpush1.msra.mxu0 0.0
        %436 = vmatprep.subr.mxu0 0.0
        %437 = vmatpush1.msra.mxu0 0.0
        %438 = vmatprep.subr.mxu0 0.0
        %439 = vmatpush1.msra.mxu0 0.0
        %440 = vmatprep.subr.mxu0 0.0
        %441 = vmatpush1.msra.mxu0 0.0
        %442 = vmatprep.subr.mxu0 0.0
        %443 = vmatpush1.msra.mxu0 0.0
        %444 = vmatprep.subr.mxu0 0.0
        %445 = vmatpush1.msra.mxu0 0.0
        %446 = vmatprep.subr.mxu0 0.0
        %447 = vmatpush1.msra.mxu0 0.0
        %448 = vmatprep.subr.mxu0 0.0
        %449 = vmatpush1.msra.mxu0 0.0
        %450 = vmatprep.subr.mxu0 0.0
        %451 = vmatpush1.msra.mxu0 0.0
        %452 = vmatprep.subr.mxu0 0.0
        %453 = vmatpush1.msra.mxu0 0.0
        %454 = vmatprep.subr.mxu0 0.0
        %455 = vmatpush1.msra.mxu0 0.0
        %456 = vmatprep.subr.mxu0 0.0
        %457 = vmatpush1.msra.mxu0 0.0
        %458 = vmatprep.subr.mxu0 0.0
        %459 = vmatpush1.msra.mxu0 0.0
        %460 = vmatprep.subr.mxu0 0.0
        %461 = vmatpush1.msra.mxu0 0.0
        %462 = vmatprep.subr.mxu0 0.0
        %463 = vmatpush1.msra.mxu0 0.0
        %464 = vmatprep.subr.mxu0 0.0
        %465 = vmatpush1.msra.mxu0 0.0
        %466 = vmatprep.subr.mxu0 0.0
        %467 = vmatpush1.msra.mxu0 0.0
        %468 = vmatprep.subr.mxu0 0.0
        %469 = vmatpush1.msra.mxu0 0.0
        %470 = vmatprep.mubr.f32.mxu0 0.0
        %471 = vmatmul.mubr.f32.gmra.mrb[0].mxu0 %v395
        %v472 = vpop.f32.mrb[0].mxu0
        %v473 = vadd.f32 0.0, %v472
        %v474 = vpop.f32.mrb[0].mxu0
        %475 = vmatprep.mubr.f32.mxu0 0.0
        %476 = vmatmul.mubr.f32.gmra.mrb[0].mxu0 %v398
        %v477 = vpop.f32.mrb[0].mxu0
        %v478 = vadd.f32 0.0, %v477
        %v479 = vpop.f32.mrb[0].mxu0
        %480 = vmatprep.mubr.f32.mxu0 0.0
        %481 = vmatmul.mubr.f32.gmra.mrb[0].mxu0 %v401
        %v482 = vpop.f32.mrb[0].mxu0
        %v483 = vadd.f32 0.0, %v482
        %v484 = vpop.f32.mrb[0].mxu0
        %485 = vmatprep.mubr.f32.mxu0 0.0
        %486 = vmatmul.mubr.f32.gmra.mrb[0].mxu0 %v404
        %v487 = vpop.f32.mrb[0].mxu0
        %v488 = vadd.f32 0.0, %v487
        %v489 = vpop.f32.mrb[0].mxu0
        %490 = vdwg.mxu0
        %v491 = vld [vmem:[%s2] sm:$0xff]
        %v492 = vld [vmem:[%s2 + $0x8] sm:$0xff]
        %v493 = vld [vmem:[%s2 + $0x10] sm:$0xff]
        %v494 = vld [vmem:[%s2 + $0x18] sm:$0xff]
        %v495 = vld [vmem:[%s3] sm:$0x1]
        %v497 = vlaneseq
        %v498 = vshrl.u32 %v497, 7
        %v499 = vsub.s32 0, %v498
        %v500 = vrot.slane %v495, %v499
        %vm502 = vcmask 261120
        %v504 = vsel %vm502, %v388, 0
        %v507 = vsel %vm502, %v473, 0
        %v510 = vsel %vm502, %v478, 0
        %v513 = vsel %vm502, %v483, 0
        %v516 = vsel %vm502, %v488, 0
        %518 = vmatprep.subr.mxu0 0.0
        %519 = vmatpush1.msra.mxu0 %v491
        %520 = vmatprep.subr.mxu0 0.0
        %521 = vmatpush1.msra.mxu0 %v492
        %522 = vmatprep.subr.mxu0 0.0
        %523 = vmatpush1.msra.mxu0 %v493
        %524 = vmatprep.subr.mxu0 0.0
        %525 = vmatpush1.msra.mxu0 %v494
        %526 = vmatprep.subr.mxu0 0.0
        %527 = vmatpush1.msra.mxu0 0.0
        %528 = vmatprep.subr.mxu0 0.0
        %529 = vmatpush1.msra.mxu0 0.0
        %530 = vmatprep.subr.mxu0 0.0
        %531 = vmatpush1.msra.mxu0 0.0
        %532 = vmatprep.subr.mxu0 0.0
        %533 = vmatpush1.msra.mxu0 0.0
        %534 = vmatprep.subr.mxu0 0.0
        %535 = vmatpush1.msra.mxu0 0.0
        %536 = vmatprep.subr.mxu0 0.0
        %537 = vmatpush1.msra.mxu0 0.0
        %538 = vmatprep.subr.mxu0 0.0
        %539 = vmatpush1.msra.mxu0 0.0
        %540 = vmatprep.subr.mxu0 0.0
        %541 = vmatpush1.msra.mxu0 0.0
        %542 = vmatprep.subr.mxu0 0.0
        %543 = vmatpush1.msra.mxu0 0.0
        %544 = vmatprep.subr.mxu0 0.0
        %545 = vmatpush1.msra.mxu0 0.0
        %546 = vmatprep.subr.mxu0 0.0
        %547 = vmatpush1.msra.mxu0 0.0
        %548 = vmatprep.subr.mxu0 0.0
        %549 = vmatpush1.msra.mxu0 0.0
        %550 = vmatprep.subr.mxu0 0.0
        %551 = vmatpush1.msra.mxu0 0.0
        %552 = vmatprep.subr.mxu0 0.0
        %553 = vmatpush1.msra.mxu0 0.0
        %554 = vmatprep.subr.mxu0 0.0
        %555 = vmatpush1.msra.mxu0 0.0
        %556 = vmatprep.subr.mxu0 0.0
        %557 = vmatpush1.msra.mxu0 0.0
        %558 = vmatprep.subr.mxu0 0.0
        %559 = vmatpush1.msra.mxu0 0.0
        %560 = vmatprep.subr.mxu0 0.0
        %561 = vmatpush1.msra.mxu0 0.0
        %562 = vmatprep.subr.mxu0 0.0
        %563 = vmatpush1.msra.mxu0 0.0
        %564 = vmatprep.subr.mxu0 0.0
        %565 = vmatpush1.msra.mxu0 0.0
        %566 = vmatprep.subr.mxu0 0.0
        %567 = vmatpush1.msra.mxu0 0.0
        %568 = vmatprep.subr.mxu0 0.0
        %569 = vmatpush1.msra.mxu0 0.0
        %570 = vmatprep.subr.mxu0 0.0
        %571 = vmatpush1.msra.mxu0 0.0
        %572 = vmatprep.subr.mxu0 0.0
        %573 = vmatpush1.msra.mxu0 0.0
        %574 = vmatprep.subr.mxu0 0.0
        %575 = vmatpush1.msra.mxu0 0.0
        %576 = vmatprep.subr.mxu0 0.0
        %577 = vmatpush1.msra.mxu0 0.0
        %578 = vmatprep.subr.mxu0 0.0
        %579 = vmatpush1.msra.mxu0 0.0
        %580 = vmatprep.subr.mxu0 0.0
        %581 = vmatpush1.msra.mxu0 0.0
        %582 = vmatprep.mubr.f32.mxu0 0.0
        %583 = vmatmul.mubr.f32.gmra.mrb[0].mxu0 %v504
        %v584 = vpop.f32.mrb[0].mxu0
        %v585 = vadd.f32 %v500, %v584
        %v586 = vpop.f32.mrb[0].mxu0
        %587 = vmatprep.mubr.f32.mxu0 0.0
        %588 = vmatmul.mubr.f32.gmra.mrb[0].mxu0 %v507
        %v589 = vpop.f32.mrb[0].mxu0
        %v590 = vadd.f32 %v500, %v589
        %v591 = vpop.f32.mrb[0].mxu0
        %592 = vmatprep.mubr.f32.mxu0 0.0
        %593 = vmatmul.mubr.f32.gmra.mrb[0].mxu0 %v510
        %v594 = vpop.f32.mrb[0].mxu0
        %v595 = vadd.f32 %v500, %v594
        %v596 = vpop.f32.mrb[0].mxu0
        %597 = vmatprep.mubr.f32.mxu0 0.0
        %598 = vmatmul.mubr.f32.gmra.mrb[0].mxu0 %v513
        %v599 = vpop.f32.mrb[0].mxu0
        %v600 = vadd.f32 %v500, %v599
        %v601 = vpop.f32.mrb[0].mxu0
        %602 = vmatprep.mubr.f32.mxu0 0.0
        %603 = vmatmul.mubr.f32.gmra.mrb[0].mxu0 %v516
        %v604 = vpop.f32.mrb[0].mxu0
        %v605 = vadd.f32 %v500, %v604
        %v606 = vpop.f32.mrb[0].mxu0
        %607 = vdwg.mxu0
        %v608 = vld [vmem:[%s4] sm:$0xff]
        %v609 = vld [vmem:[%s4 + $0x8] sm:$0xff]
        %v610 = vld [vmem:[%s4 + $0x10] sm:$0xff]
        %v611 = vld [vmem:[%s4 + $0x18] sm:$0xff]
        %v612 = vld [vmem:[%s5] sm:$0x1]
        %v614 = vlaneseq
        %v615 = vshrl.u32 %v614, 7
        %v616 = vsub.s32 0, %v615
        %v617 = vrot.slane %v612, %v616
        %619 = vmatprep.subr.mxu0 0.0
        %620 = vmatpush1.msra.mxu0 %v608
        %621 = vmatprep.subr.mxu0 0.0
        %622 = vmatpush1.msra.mxu0 %v609
        %623 = vmatprep.subr.mxu0 0.0
        %624 = vmatpush1.msra.mxu0 %v610
        %625 = vmatprep.subr.mxu0 0.0
        %626 = vmatpush1.msra.mxu0 %v611
        %627 = vmatprep.subr.mxu0 0.0
        %628 = vmatpush1.msra.mxu0 0.0
        %629 = vmatprep.subr.mxu0 0.0
        %630 = vmatpush1.msra.mxu0 0.0
        %631 = vmatprep.subr.mxu0 0.0
        %632 = vmatpush1.msra.mxu0 0.0
        %633 = vmatprep.subr.mxu0 0.0
        %634 = vmatpush1.msra.mxu0 0.0
        %635 = vmatprep.subr.mxu0 0.0
        %636 = vmatpush1.msra.mxu0 0.0
        %637 = vmatprep.subr.mxu0 0.0
        %638 = vmatpush1.msra.mxu0 0.0
        %639 = vmatprep.subr.mxu0 0.0
        %640 = vmatpush1.msra.mxu0 0.0
        %641 = vmatprep.subr.mxu0 0.0
        %642 = vmatpush1.msra.mxu0 0.0
        %643 = vmatprep.subr.mxu0 0.0
        %644 = vmatpush1.msra.mxu0 0.0
        %645 = vmatprep.subr.mxu0 0.0
        %646 = vmatpush1.msra.mxu0 0.0
        %647 = vmatprep.subr.mxu0 0.0
        %648 = vmatpush1.msra.mxu0 0.0
        %649 = vmatprep.subr.mxu0 0.0
        %650 = vmatpush1.msra.mxu0 0.0
        %651 = vmatprep.subr.mxu0 0.0
        %652 = vmatpush1.msra.mxu0 0.0
        %653 = vmatprep.subr.mxu0 0.0
        %654 = vmatpush1.msra.mxu0 0.0
        %655 = vmatprep.subr.mxu0 0.0
        %656 = vmatpush1.msra.mxu0 0.0
        %657 = vmatprep.subr.mxu0 0.0
        %658 = vmatpush1.msra.mxu0 0.0
        %659 = vmatprep.subr.mxu0 0.0
        %660 = vmatpush1.msra.mxu0 0.0
        %661 = vmatprep.subr.mxu0 0.0
        %662 = vmatpush1.msra.mxu0 0.0
        %663 = vmatprep.subr.mxu0 0.0
        %664 = vmatpush1.msra.mxu0 0.0
        %665 = vmatprep.subr.mxu0 0.0
        %666 = vmatpush1.msra.mxu0 0.0
        %667 = vmatprep.subr.mxu0 0.0
        %668 = vmatpush1.msra.mxu0 0.0
        %669 = vmatprep.subr.mxu0 0.0
        %670 = vmatpush1.msra.mxu0 0.0
        %671 = vmatprep.subr.mxu0 0.0
        %672 = vmatpush1.msra.mxu0 0.0
        %673 = vmatprep.subr.mxu0 0.0
        %674 = vmatpush1.msra.mxu0 0.0
        %675 = vmatprep.subr.mxu0 0.0
        %676 = vmatpush1.msra.mxu0 0.0
        %677 = vmatprep.subr.mxu0 0.0
        %678 = vmatpush1.msra.mxu0 0.0
        %679 = vmatprep.subr.mxu0 0.0
        %680 = vmatpush1.msra.mxu0 0.0
        %681 = vmatprep.subr.mxu0 0.0
        %682 = vmatpush1.msra.mxu0 0.0
        %683 = vmatprep.mubr.f32.mxu0 0.0
        %684 = vmatmul.mubr.f32.gmra.mrb[0].mxu0 %v507
        %v685 = vpop.f32.mrb[0].mxu0
        %v686 = vadd.f32 %v617, %v685
        %v687 = vpop.f32.mrb[0].mxu0
        %688 = vmatprep.mubr.f32.mxu0 0.0
        %689 = vmatmul.mubr.f32.gmra.mrb[0].mxu0 %v510
        %v690 = vpop.f32.mrb[0].mxu0
        %v691 = vadd.f32 %v617, %v690
        %v692 = vpop.f32.mrb[0].mxu0
        %693 = vmatprep.mubr.f32.mxu0 0.0
        %694 = vmatmul.mubr.f32.gmra.mrb[0].mxu0 %v513
        %v695 = vpop.f32.mrb[0].mxu0
        %v696 = vadd.f32 %v617, %v695
        %v697 = vpop.f32.mrb[0].mxu0
        %698 = vmatprep.mubr.f32.mxu0 0.0
        %699 = vmatmul.mubr.f32.gmra.mrb[0].mxu0 %v516
        %v700 = vpop.f32.mrb[0].mxu0
        %v701 = vadd.f32 %v617, %v700
        %v702 = vpop.f32.mrb[0].mxu0
        %703 = vdwg.mxu0
        %v704 = vmul.f32 %v585, %v590
        %v705 = vmul.f32 %v585, %v595
        %v706 = vmul.f32 %v585, %v600
        %v707 = vmul.f32 %v585, %v605
        %v708 = vld [vmem:[%s8] sm:$0xff]
        %v709 = vld [vmem:[%s8 + $0x8] sm:$0xff]
        %v710 = vld [vmem:[%s8 + $0x10] sm:$0xff]
        %v711 = vld [vmem:[%s8 + $0x18] sm:$0xff]
        %v713 = vsel %vm502, %v704, 0
        %v716 = vsel %vm502, %v705, 0
        %v719 = vsel %vm502, %v706, 0
        %v722 = vsel %vm502, %v707, 0
        %724 = vmatprep.subr.mxu0 0.0
        %725 = vmatpush1.msra.mxu0 %v708
        %726 = vmatprep.subr.mxu0 0.0
        %727 = vmatpush1.msra.mxu0 %v709
        %728 = vmatprep.subr.mxu0 0.0
        %729 = vmatpush1.msra.mxu0 %v710
        %730 = vmatprep.subr.mxu0 0.0
        %731 = vmatpush1.msra.mxu0 %v711
        %732 = vmatprep.subr.mxu0 0.0
        %733 = vmatpush1.msra.mxu0 0.0
        %734 = vmatprep.subr.mxu0 0.0
        %735 = vmatpush1.msra.mxu0 0.0
        %736 = vmatprep.subr.mxu0 0.0
        %737 = vmatpush1.msra.mxu0 0.0
        %738 = vmatprep.subr.mxu0 0.0
        %739 = vmatpush1.msra.mxu0 0.0
        %740 = vmatprep.subr.mxu0 0.0
        %741 = vmatpush1.msra.mxu0 0.0
        %742 = vmatprep.subr.mxu0 0.0
        %743 = vmatpush1.msra.mxu0 0.0
        %744 = vmatprep.subr.mxu0 0.0
        %745 = vmatpush1.msra.mxu0 0.0
        %746 = vmatprep.subr.mxu0 0.0
        %747 = vmatpush1.msra.mxu0 0.0
        %748 = vmatprep.subr.mxu0 0.0
        %749 = vmatpush1.msra.mxu0 0.0
        %750 = vmatprep.subr.mxu0 0.0
        %751 = vmatpush1.msra.mxu0 0.0
        %752 = vmatprep.subr.mxu0 0.0
        %753 = vmatpush1.msra.mxu0 0.0
        %754 = vmatprep.subr.mxu0 0.0
        %755 = vmatpush1.msra.mxu0 0.0
        %756 = vmatprep.subr.mxu0 0.0
        %757 = vmatpush1.msra.mxu0 0.0
        %758 = vmatprep.subr.mxu0 0.0
        %759 = vmatpush1.msra.mxu0 0.0
        %760 = vmatprep.subr.mxu0 0.0
        %761 = vmatpush1.msra.mxu0 0.0
        %762 = vmatprep.subr.mxu0 0.0
        %763 = vmatpush1.msra.mxu0 0.0
        %764 = vmatprep.subr.mxu0 0.0
        %765 = vmatpush1.msra.mxu0 0.0
        %766 = vmatprep.subr.mxu0 0.0
        %767 = vmatpush1.msra.mxu0 0.0
        %768 = vmatprep.subr.mxu0 0.0
        %769 = vmatpush1.msra.mxu0 0.0
        %770 = vmatprep.subr.mxu0 0.0
        %771 = vmatpush1.msra.mxu0 0.0
        %772 = vmatprep.subr.mxu0 0.0
        %773 = vmatpush1.msra.mxu0 0.0
        %774 = vmatprep.subr.mxu0 0.0
        %775 = vmatpush1.msra.mxu0 0.0
        %776 = vmatprep.subr.mxu0 0.0
        %777 = vmatpush1.msra.mxu0 0.0
        %778 = vmatprep.subr.mxu0 0.0
        %779 = vmatpush1.msra.mxu0 0.0
        %780 = vmatprep.subr.mxu0 0.0
        %781 = vmatpush1.msra.mxu0 0.0
        %782 = vmatprep.subr.mxu0 0.0
        %783 = vmatpush1.msra.mxu0 0.0
        %784 = vmatprep.subr.mxu0 0.0
        %785 = vmatpush1.msra.mxu0 0.0
        %786 = vmatprep.subr.mxu0 0.0
        %787 = vmatpush1.msra.mxu0 0.0
        %788 = vmatprep.mubr.f32.mxu0 0.0
        %789 = vmatmul.mubr.f32.gmra.mrb[0].mxu0 %v713
        %v790 = vpop.f32.mrb[0].mxu0
        %v791 = vadd.f32 0.0, %v790
        %v792 = vpop.f32.mrb[0].mxu0
        %793 = vmatprep.mubr.f32.mxu0 0.0
        %794 = vmatmul.mubr.f32.gmra.mrb[0].mxu0 %v716
        %v795 = vpop.f32.mrb[0].mxu0
        %v796 = vadd.f32 0.0, %v795
        %v797 = vpop.f32.mrb[0].mxu0
        %798 = vmatprep.mubr.f32.mxu0 0.0
        %799 = vmatmul.mubr.f32.gmra.mrb[0].mxu0 %v719
        %v800 = vpop.f32.mrb[0].mxu0
        %v801 = vadd.f32 0.0, %v800
        %v802 = vpop.f32.mrb[0].mxu0
        %803 = vmatprep.mubr.f32.mxu0 0.0
        %804 = vmatmul.mubr.f32.gmra.mrb[0].mxu0 %v722
        %v805 = vpop.f32.mrb[0].mxu0
        %v806 = vadd.f32 0.0, %v805
        %v807 = vpop.f32.mrb[0].mxu0
        %808 = vdwg.mxu0
        %v809 = vmul.f32 %v791, 0.17677669
        %v810 = vmul.f32 %v796, 0.17677669
        %v811 = vmul.f32 %v801, 0.17677669
        %v812 = vmul.f32 %v806, 0.17677669
        %vm813 = vcmask 31744
        %v814 = vsel %vm813, %v809, -inf
        %v815 = vsel %vm813, %v810, -inf
        %v816 = vsel %vm813, %v811, -inf
        %v817 = vsel %vm813, %v812, -inf
        %v818 = vmax.f32 %v814, %v815
        %v819 = vmax.f32 %v816, %v817
        %v820 = vmax.f32 %v818, %v819
        %v821 = vsub.f32 %v809, %v820
        %v822 = vsub.f32 %v810, %v820
        %v823 = vsub.f32 %v811, %v820
        %v824 = vsub.f32 %v812, %v820
        %v825 = vmul.f32 %v821, 1.442695
        %v826 = vpow.pop %v825
        %v827 = vmul.f32 %v822, 1.442695
        %v828 = vpow.pop %v827
        %v829 = vmul.f32 %v823, 1.442695
        %v830 = vpow.pop %v829
        %v831 = vmul.f32 %v824, 1.442695
        %v832 = vpow.pop %v831
        %v833 = vsel %vm813, %v826, 0.0
        %v834 = vsel %vm813, %v828, 0.0
        %v835 = vadd.f32 %v833, %v834
        %v836 = vsel %vm813, %v830, 0.0
        %v837 = vadd.f32 %v835, %v836
        %v838 = vsel %vm813, %v832, 0.0
        %v839 = vadd.f32 %v837, %v838
        %v840 = vrcp.pop %v839
        %v841 = vmul.f32 %v826, %v840
        %v842 = vmul.f32 %v828, %v840
        %v843 = vmul.f32 %v830, %v840
        %v844 = vmul.f32 %v832, %v840
        %v845 = vld [vmem:[%s9] sm:$0xf]
        %v847 = vsel %vm813, %v841, 0
        %v850 = vsel %vm813, %v842, 0
        %v853 = vsel %vm813, %v843, 0
        %v856 = vsel %vm813, %v844, 0
        %vm858 = vcmask 1043456
        %v860 = vsel %vm858, %v845, 0
        %862 = vmatprep.subr.mxu0 0.0
        %863 = vmatpush1.msra.mxu0 %v860
        %864 = vmatprep.subr.mxu0 0.0
        %865 = vmatpush1.msra.mxu0 0.0
        %866 = vmatprep.subr.mxu0 0.0
        %867 = vmatpush1.msra.mxu0 0.0
        %868 = vmatprep.subr.mxu0 0.0
        %869 = vmatpush1.msra.mxu0 0.0
        %870 = vmatprep.subr.mxu0 0.0
        %871 = vmatpush1.msra.mxu0 0.0
        %872 = vmatprep.subr.mxu0 0.0
        %873 = vmatpush1.msra.mxu0 0.0
        %874 = vmatprep.subr.mxu0 0.0
        %875 = vmatpush1.msra.mxu0 0.0
        %876 = vmatprep.subr.mxu0 0.0
        %877 = vmatpush1.msra.mxu0 0.0
        %878 = vmatprep.subr.mxu0 0.0
        %879 = vmatpush1.msra.mxu0 0.0
        %880 = vmatprep.subr.mxu0 0.0
        %881 = vmatpush1.msra.mxu0 0.0
        %882 = vmatprep.subr.mxu0 0.0
        %883 = vmatpush1.msra.mxu0 0.0
        %884 = vmatprep.subr.mxu0 0.0
        %885 = vmatpush1.msra.mxu0 0.0
        %886 = vmatprep.subr.mxu0 0.0
        %887 = vmatpush1.msra.mxu0 0.0
        %888 = vmatprep.subr.mxu0 0.0
        %889 = vmatpush1.msra.mxu0 0.0
        %890 = vmatprep.subr.mxu0 0.0
        %891 = vmatpush1.msra.mxu0 0.0
        %892 = vmatprep.subr.mxu0 0.0
        %893 = vmatpush1.msra.mxu0 0.0
        %894 = vmatprep.subr.mxu0 0.0
        %895 = vmatpush1.msra.mxu0 0.0
        %896 = vmatprep.subr.mxu0 0.0
        %897 = vmatpush1.msra.mxu0 0.0
        %898 = vmatprep.subr.mxu0 0.0
        %899 = vmatpush1.msra.mxu0 0.0
        %900 = vmatprep.subr.mxu0 0.0
        %901 = vmatpush1.msra.mxu0 0.0
        %902 = vmatprep.subr.mxu0 0.0
        %903 = vmatpush1.msra.mxu0 0.0
        %904 = vmatprep.subr.mxu0 0.0
        %905 = vmatpush1.msra.mxu0 0.0
        %906 = vmatprep.subr.mxu0 0.0
        %907 = vmatpush1.msra.mxu0 0.0
        %908 = vmatprep.subr.mxu0 0.0
        %909 = vmatpush1.msra.mxu0 0.0
        %910 = vmatprep.subr.mxu0 0.0
        %911 = vmatpush1.msra.mxu0 0.0
        %912 = vmatprep.subr.mxu0 0.0
        %913 = vmatpush1.msra.mxu0 0.0
        %914 = vmatprep.subr.mxu0 0.0
        %915 = vmatpush1.msra.mxu0 0.0
        %916 = vmatprep.subr.mxu0 0.0
        %917 = vmatpush1.msra.mxu0 0.0
        %918 = vmatprep.subr.mxu0 0.0
        %919 = vmatpush1.msra.mxu0 0.0
        %920 = vmatprep.subr.mxu0 0.0
        %921 = vmatpush1.msra.mxu0 0.0
        %922 = vmatprep.subr.mxu0 0.0
        %923 = vmatpush1.msra.mxu0 0.0
        %924 = vmatprep.subr.mxu0 0.0
        %925 = vmatpush1.msra.mxu0 0.0
        %926 = vmatprep.mubr.f32.mxu0 0.0
        %927 = vmatmul.mubr.f32.gmra.mrb[0].mxu0 %v847
        %v928 = vpop.f32.mrb[0].mxu0
        %v929 = vadd.f32 0.0, %v928
        %v930 = vpop.f32.mrb[0].mxu0
        %931 = vmatprep.mubr.f32.mxu0 0.0
        %932 = vmatmul.mubr.f32.gmra.mrb[0].mxu0 %v850
        %v933 = vpop.f32.mrb[0].mxu0
        %v934 = vadd.f32 0.0, %v933
        %v935 = vpop.f32.mrb[0].mxu0
        %936 = vmatprep.mubr.f32.mxu0 0.0
        %937 = vmatmul.mubr.f32.gmra.mrb[0].mxu0 %v853
        %v938 = vpop.f32.mrb[0].mxu0
        %v939 = vadd.f32 0.0, %v938
        %v940 = vpop.f32.mrb[0].mxu0
        %941 = vmatprep.mubr.f32.mxu0 0.0
        %942 = vmatmul.mubr.f32.gmra.mrb[0].mxu0 %v856
        %v943 = vpop.f32.mrb[0].mxu0
        %v944 = vadd.f32 0.0, %v943
        %v945 = vpop.f32.mrb[0].mxu0
        %946 = vdwg.mxu0
        %v947 = vmul.f32 %v929, %v686
        %v948 = vmul.f32 %v934, %v691
        %v949 = vmul.f32 %v939, %v696
        %v950 = vmul.f32 %v944, %v701
        %v951 = vsel %vm502, %v947, 0.0
        %v952 = vsel %vm502, %v948, 0.0
        %v953 = vadd.f32 %v951, %v952
        %v954 = vsel %vm502, %v949, 0.0
        %v955 = vadd.f32 %v953, %v954
        %v956 = vsel %vm502, %v950, 0.0
        %v957 = vadd.f32 %v955, %v956
        %v958 = vld [vmem:[%s6] sm:$0xff]
        %v959 = vld [vmem:[%s6 + $0x8] sm:$0xff]
        %v960 = vld [vmem:[%s6 + $0x10] sm:$0xff]
        %v961 = vld [vmem:[%s6 + $0x18] sm:$0xff]
        %v962 = vld [vmem:[#allocation5] sm:$0x1]
        %v964 = vlaneseq
        %v965 = vshrl.u32 %v964, 7
        %v966 = vsub.s32 0, %v965
        %v967 = vrot.slane %v962, %v966
        %v970 = vsel %vm502, %v957, 0
        %972 = vmatprep.subr.mxu0 0.0
        %973 = vmatpush1.msra.mxu0 %v958
        %974 = vmatprep.subr.mxu0 0.0
        %975 = vmatpush1.msra.mxu0 %v959
        %976 = vmatprep.subr.mxu0 0.0
        %977 = vmatpush1.msra.mxu0 %v960
        %978 = vmatprep.subr.mxu0 0.0
        %979 = vmatpush1.msra.mxu0 %v961
        %980 = vmatprep.subr.mxu0 0.0
        %981 = vmatpush1.msra.mxu0 0.0
        %982 = vmatprep.subr.mxu0 0.0
        %983 = vmatpush1.msra.mxu0 0.0
        %984 = vmatprep.subr.mxu0 0.0
        %985 = vmatpush1.msra.mxu0 0.0
        %986 = vmatprep.subr.mxu0 0.0
        %987 = vmatpush1.msra.mxu0 0.0
        %988 = vmatprep.subr.mxu0 0.0
        %989 = vmatpush1.msra.mxu0 0.0
        %990 = vmatprep.subr.mxu0 0.0
        %991 = vmatpush1.msra.mxu0 0.0
        %992 = vmatprep.subr.mxu0 0.0
        %993 = vmatpush1.msra.mxu0 0.0
        %994 = vmatprep.subr.mxu0 0.0
        %995 = vmatpush1.msra.mxu0 0.0
        %996 = vmatprep.subr.mxu0 0.0
        %997 = vmatpush1.msra.mxu0 0.0
        %998 = vmatprep.subr.mxu0 0.0
        %999 = vmatpush1.msra.mxu0 0.0
        %1000 = vmatprep.subr.mxu0 0.0
        %1001 = vmatpush1.msra.mxu0 0.0
        %1002 = vmatprep.subr.mxu0 0.0
        %1003 = vmatpush1.msra.mxu0 0.0
        %1004 = vmatprep.subr.mxu0 0.0
        %1005 = vmatpush1.msra.mxu0 0.0
        %1006 = vmatprep.subr.mxu0 0.0
        %1007 = vmatpush1.msra.mxu0 0.0
        %1008 = vmatprep.subr.mxu0 0.0
        %1009 = vmatpush1.msra.mxu0 0.0
        %1010 = vmatprep.subr.mxu0 0.0
        %1011 = vmatpush1.msra.mxu0 0.0
        %1012 = vmatprep.subr.mxu0 0.0
        %1013 = vmatpush1.msra.mxu0 0.0
        %1014 = vmatprep.subr.mxu0 0.0
        %1015 = vmatpush1.msra.mxu0 0.0
        %1016 = vmatprep.subr.mxu0 0.0
        %1017 = vmatpush1.msra.mxu0 0.0
        %1018 = vmatprep.subr.mxu0 0.0
        %1019 = vmatpush1.msra.mxu0 0.0
        %1020 = vmatprep.subr.mxu0 0.0
        %1021 = vmatpush1.msra.mxu0 0.0
        %1022 = vmatprep.subr.mxu0 0.0
        %1023 = vmatpush1.msra.mxu0 0.0
        %1024 = vmatprep.subr.mxu0 0.0
        %1025 = vmatpush1.msra.mxu0 0.0
        %1026 = vmatprep.subr.mxu0 0.0
        %1027 = vmatpush1.msra.mxu0 0.0
        %1028 = vmatprep.subr.mxu0 0.0
        %1029 = vmatpush1.msra.mxu0 0.0
        %1030 = vmatprep.subr.mxu0 0.0
        %1031 = vmatpush1.msra.mxu0 0.0
        %1032 = vmatprep.subr.mxu0 0.0
        %1033 = vmatpush1.msra.mxu0 0.0
        %1034 = vmatprep.subr.mxu0 0.0
        %1035 = vmatpush1.msra.mxu0 0.0
        %1036 = vmatprep.mubr.f32.mxu0 0.0
        %1037 = vmatmul.mubr.f32.gmra.mrb[0].mxu0 %v970
        %v1038 = vpop.f32.mrb[0].mxu0
        %v1039 = vadd.f32 %v967, %v1038
        %v1040 = vpop.f32.mrb[0].mxu0
        %1041 = vdwg.mxu0
        %1042 = vst.msk [vmem:[%s387] sm:$0xff] %vm502, %v1039
        %s1043 = sand.u32 %s251, 1
        %s1044 = scalar_lea.sflag [#allocation4], %s1043
        %s1045 = sand.u32 %s251, 1
        %s1046 = smul.addr %s1045, 8
        %s1047 = scalar_lea.vmem [#allocation7], %s1046
        // Predicated region
        $region69: #{tpu_custom_call.1} parent=59 // pred_check
          %p1048 = pneg %p261
        $region70: #{tpu_custom_call.1} parent=59 // pred_check_branch
          %1050 = sbr.rel (%p1048) target = $region72
        $region71: #{tpu_custom_call.1} parent=59 // pred_region
          %s1052 = ssub.s32 128, 128
          %1053 = vsyncadd %s1044, %s1052
          %s1054 = smul.addr %s28, 128
          %s1055 = scalar_lea.hbm %s10, %s1054
          %s1057 = sshll.u32 %s1047, 4
          %s1058 = int_to_ptr.vmem [resolvable:$true] %s1057
          %1060 = dma.vmem_to_hbm [thread:$0]  %s1058, 128, %s1055, %s1044
        $region72: #{tpu_custom_call.1} parent=59 // pred_fallthru
          _
      $region60: #{tpu_custom_call.1} parent=5 // pred_fallthru
        _
      %p1061 = scmp.le.s32.totalorder 2, %s23
      // Predicated region
      $region73: #{tpu_custom_call.1} parent=5 // pred_check
        %p1062 = pneg %p1061
      $region74: #{tpu_custom_call.1} parent=5 // pred_check_branch
        %1064 = sbr.rel (%p1062) target = $region76
      $region75: #{tpu_custom_call.1} parent=5 // pred_region
        %s1065 = ssub.s32 %s23, 2
        // Predicated region
        $region77: #{tpu_custom_call.1} parent=75 // pred_check
          %p1066 = pneg %p267
        $region78: #{tpu_custom_call.1} parent=75 // pred_check_branch
          %1068 = sbr.rel (%p1066) target = $region80
        $region79: #{tpu_custom_call.1} parent=75 // pred_region
          %s1069 = sand.u32 %s252, 1
          %s1070 = scalar_lea.sflag [#allocation4], %s1069
          %s1071 = sand.u32 %s252, 1
          %s1072 = smul.addr %s1071, 8
          %s1073 = scalar_lea.vmem [#allocation7], %s1072
          %1074 = dma.done %s1070, 128
        $region80: #{tpu_custom_call.1} parent=75 // pred_fallthru
          _
      $region76: #{tpu_custom_call.1} parent=5 // pred_fallthru
        _
    $region6: #{tpu_custom_call.1} parent=1 // loop_footer
      %s27 = sadd.s32 1, %s23
    $region7: #{tpu_custom_call.1} parent=1 // loop_footer_branch
      %22 = sbr.rel target = $region3
    $region8: #{tpu_custom_call.1} parent=1 // loop_exit
      _
    %1075 = vsyncpa [#allocation3], 1
    %s1076 = scalar_lea.sflag [#allocation3], 1
    %1077 = vsyncpa %s1076, 1
    %1078 = vsyncpa [#allocation6], 1
    %1079 = vsyncpa [#allocation4], 1
    %s1080 = scalar_lea.sflag [#allocation4], 1
    %1081 = vsyncpa %s1080, 1

</llo_original>
